<compile_context>
chip_gen: v7x
topology: tpu7x:2x2x1
jax: 0.10.0
libtpu: 0.0.40
codegen_flags: <defaults>
</compile_context>

<pallas_src>
import functools

import jax
import jax.numpy as jnp
import numpy as np
from jax.experimental import pallas as pl
from jax.experimental.pallas import tpu as pltpu

LANE = 128      # lane width of a vreg / MXU column block
SUBLANE_BF16 = 16


def _round_up(x, m):
    return (x + m - 1) // m * m


def _pad2(a, rows, cols):
    r, c = a.shape
    return jnp.pad(a, ((0, rows - r), (0, cols - c)))


# ---------------------------------------------------------------------------
# Fused forward kernel
#   grid = (batch tiles ["parallel"], spatial tiles ["arbitrary"])
# ---------------------------------------------------------------------------
def _fused_forward_kernel(patches_ref, conv_w_ref, head_w_ref, head_b_ref,
                          yd_w_ref, yd_b_ref, f_ref, yd_ref, pooled_acc,
                          *, inv_hw):
    s = pl.program_id(1)

    @pl.when(s == 0)
    def _init():
        pooled_acc[...] = jnp.zeros_like(pooled_acc)

    tile_b, tile_hw, k_pad = patches_ref.shape
    c_pad = conv_w_ref.shape[1]

    # conv3x3 (+ bias via the appended "ones" column) as a single im2col matmul
    # on the MXU: bf16 inputs, f32 accumulation.  Padded spatial rows have a
    # zero ones-column, so they come out of the ReLU as exact zeros.
    x2 = patches_ref[...].reshape(tile_b * tile_hw, k_pad)      # sublane-aligned merge
    conv = jnp.dot(x2, conv_w_ref[...], preferred_element_type=jnp.float32)
    conv = jnp.maximum(conv, 0.0)                               # (tile_b*tile_hw, c_pad)

    # Global average pool folded into the spatial tile loop: per-sample
    # cross-sublane reduction accumulated in f32 VMEM scratch (no pooling
    # matrix, no extra HBM traffic).
    pooled_acc[...] += jnp.sum(conv.reshape(tile_b, tile_hw, c_pad), axis=1)

    # Tail (head + classifier + domain discriminator) only on the last spatial
    # step; everything stays in VMEM and both outputs are lane-dense 128-wide.
    @pl.when(s == pl.num_programs(1) - 1)
    def _finalize():
        pooled = pooled_acc[...] * inv_hw                       # mean over H*W
        h = jnp.dot(pooled, head_w_ref[...], preferred_element_type=jnp.float32)
        h = jnp.maximum(h + head_b_ref[...], 0.0)
        f_ref[...] = h.astype(f_ref.dtype)
        yd = jnp.dot(h, yd_w_ref[...], preferred_element_type=jnp.float32)
        yd_ref[...] = (yd + yd_b_ref[...]).astype(yd_ref.dtype)


# ---------------------------------------------------------------------------
# Glue: im2col patch extraction (reshape / pad only — no hot-path compute)
# ---------------------------------------------------------------------------
def im2col_3x3_same(x_nhwc):
    """(B, H, W, C) -> (B*H*W, 9*C) patches for a 3x3 'same' conv, stride 1."""
    B, H, W, C = x_nhwc.shape
    xp = jnp.pad(x_nhwc, ((0, 0), (1, 1), (1, 1), (0, 0)))
    patches = []
    for di in range(3):
        for dj in range(3):
            patches.append(xp[:, di:di + H, dj:dj + W, :])
    p = jnp.stack(patches, axis=3)                 # (B, H, W, 9, C)
    return p.reshape(B * H * W, 9 * C)


# ---------------------------------------------------------------------------
# Parameter init (deterministic, in-script; f32 masters)
# ---------------------------------------------------------------------------
def init_params(key, c_in, c_back, hidden, num_classes, num_domains):
    ks = jax.random.split(key, 8)
    scale = 0.05
    return {
        # conv weight stored directly in (kh*kw*C_in, C_out) im2col layout
        "conv_w": scale * jax.random.normal(ks[0], (9 * c_in, c_back), jnp.float32),
        "conv_b": scale * jax.random.normal(ks[1], (c_back,), jnp.float32),
        "head_w": scale * jax.random.normal(ks[2], (c_back, hidden), jnp.float32),
        "head_b": scale * jax.random.normal(ks[3], (hidden,), jnp.float32),
        "cls_w": scale * jax.random.normal(ks[4], (hidden, num_classes), jnp.float32),
        "cls_b": scale * jax.random.normal(ks[5], (num_classes,), jnp.float32),
        "dom_w": scale * jax.random.normal(ks[6], (hidden, num_domains), jnp.float32),
        "dom_b": scale * jax.random.normal(ks[7], (num_domains,), jnp.float32),
    }


# ---------------------------------------------------------------------------
# SimpleNet forward (single fused pallas_call)
# ---------------------------------------------------------------------------
@functools.partial(jax.jit, static_argnames=("return_feature",))
def simple_net_forward(params, x_nchw, return_feature=False):
    B, C, H, W = x_nchw.shape
    hidden = params["head_w"].shape[1]
    num_classes = params["cls_w"].shape[1]
    num_domains = params["dom_w"].shape[1]
    c_back = params["conv_w"].shape[1]

    HW = H * W
    K = 9 * C
    k_pad = _round_up(K + 1, SUBLANE_BF16)    # +1: ones column carrying the conv bias
    C_PAD = _round_up(c_back, LANE)           # conv channels padded to 128 lanes
    HID_PAD = _round_up(hidden, LANE)
    N_PAD = _round_up(num_classes + num_domains, LANE)   # cls+dom packed, 128-lane out

    tile_b = B if B <= 8 else 8
    b_total = _round_up(B, tile_b)
    tile_hw = min(_round_up(HW, SUBLANE_BF16), 1024)      # bf16-sublane aligned
    hw_pad = _round_up(HW, tile_hw)

    # --- glue: NCHW->NHWC, im2col, ones/bias column, zero-pad, bf16 cast -----
    x_nhwc = jnp.transpose(x_nchw, (0, 2, 3, 1))
    patches = im2col_3x3_same(x_nhwc).reshape(B, HW, K)                 # f32
    ones = jnp.ones((B, HW, 1), jnp.float32)                            # bias column
    patches = jnp.concatenate([patches, ones], axis=-1)                 # (B, HW, K+1)
    patches = jnp.pad(patches, ((0, b_total - B), (0, hw_pad - HW),
                                (0, k_pad - (K + 1)))).astype(jnp.bfloat16)

    conv_wb = jnp.concatenate([params["conv_w"], params["conv_b"][None, :]], axis=0)
    conv_wb = _pad2(conv_wb, k_pad, C_PAD).astype(jnp.bfloat16)
    head_w = _pad2(params["head_w"], C_PAD, HID_PAD)
    head_b = _pad2(params["head_b"][None, :], 1, HID_PAD)
    yd_w = _pad2(jnp.concatenate([params["cls_w"], params["dom_w"]], axis=1),
                 HID_PAD, N_PAD)
    yd_b = _pad2(jnp.concatenate([params["cls_b"], params["dom_b"]])[None, :],
                 1, N_PAD)

    grid = (b_total // tile_b, hw_pad // tile_hw)
    kernel = functools.partial(_fused_forward_kernel, inv_hw=1.0 / HW)

    f_pad, yd_pad = pl.pallas_call(
        kernel,
        out_shape=(jax.ShapeDtypeStruct((b_total, HID_PAD), jnp.float32),
                   jax.ShapeDtypeStruct((b_total, N_PAD), jnp.float32)),
        grid_spec=pltpu.PrefetchScalarGridSpec(
            num_scalar_prefetch=0,
            grid=grid,
            in_specs=[
                pl.BlockSpec((tile_b, tile_hw, k_pad), lambda b, s: (b, s, 0)),  # patches
                pl.BlockSpec((k_pad, C_PAD), lambda b, s: (0, 0)),      # conv_w | bias row
                pl.BlockSpec((C_PAD, HID_PAD), lambda b, s: (0, 0)),    # head_w
                pl.BlockSpec((1, HID_PAD), lambda b, s: (0, 0)),        # head_b
                pl.BlockSpec((HID_PAD, N_PAD), lambda b, s: (0, 0)),    # yd_w (cls|dom)
                pl.BlockSpec((1, N_PAD), lambda b, s: (0, 0)),          # yd_b
            ],
            out_specs=(
                pl.BlockSpec((tile_b, HID_PAD), lambda b, s: (b, 0)),   # f (features)
                pl.BlockSpec((tile_b, N_PAD), lambda b, s: (b, 0)),     # [y | d]
            ),
            scratch_shapes=[pltpu.VMEM((tile_b, C_PAD), jnp.float32)],  # GAP accumulator
        ),
        compiler_params=pltpu.CompilerParams(
            # batch tiles are independent (megacore-shardable); the spatial
            # axis carries the GAP accumulator so it stays "arbitrary".
            dimension_semantics=("parallel", "arbitrary"),
            vmem_limit_bytes=32 * 1024 * 1024,   # safe on v5e/v6e/v7x
        ),
    )(patches, conv_wb, head_w, head_b, yd_w, yd_b)

    # slice the lane-dense padded outputs back to logical shapes
    f = f_pad[:B, :hidden]
    y = yd_pad[:B, :num_classes]
    d = yd_pad[:B, num_classes:num_classes + num_domains]

    if return_feature:
        return y, f
    return y, d, f


# ---------------------------------------------------------------------------
# Pure-JAX f32 reference (for correctness check only)
# ---------------------------------------------------------------------------
def reference_forward(params, x_nchw):
    B, C, H, W = x_nchw.shape
    x_nhwc = jnp.transpose(x_nchw, (0, 2, 3, 1))
    patches = im2col_3x3_same(x_nhwc)
    conv = jnp.maximum(patches @ params["conv_w"] + params["conv_b"], 0.0)
    pooled = jnp.mean(conv.reshape(B, H * W, -1), axis=1)
    f = jnp.maximum(pooled @ params["head_w"] + params["head_b"], 0.0)
    y = f @ params["cls_w"] + params["cls_b"]
    d = f @ params["dom_w"] + params["dom_b"]
    return y, d, f


# ---------------------------------------------------------------------------
if __name__ == "__main__":
    key = jax.random.PRNGKey(0)
    k_x, k_p = jax.random.split(key)

    B, C, H, W = 2, 4, 16, 16
    C_BACK, HIDDEN, NUM_CLASSES, NUM_DOMAINS = 32, 32, 8, 3

    x = jax.random.normal(k_x, (B, C, H, W), jnp.float32)   # NCHW input
    params = init_params(k_p, C, C_BACK, HIDDEN, NUM_CLASSES, NUM_DOMAINS)

    y, d, f = simple_net_forward(params, x)
    jax.block_until_ready((y, d, f))

    assert y.shape == (B, NUM_CLASSES)
    assert d.shape == (B, NUM_DOMAINS)
    assert f.shape == (B, HIDDEN)

    # validate against the pure-JAX f32 reference (bf16 MXU inputs -> loose tol)
    y_ref, d_ref, f_ref = reference_forward(params, x)
    np.testing.assert_allclose(np.asarray(y), np.asarray(y_ref), rtol=1e-2, atol=1e-2)
    np.testing.assert_allclose(np.asarray(d), np.asarray(d_ref), rtol=1e-2, atol=1e-2)
    np.testing.assert_allclose(np.asarray(f), np.asarray(f_ref), rtol=1e-2, atol=1e-2)

    print("KERNEL_OK")
</pallas_src>

<mosaic_0001>
module attributes {stable_mosaic.version = 11 : i64} {
  func.func @_fused_forward_kernel(%arg0: i32, %arg1: i32, %arg2: memref<2x256x48xbf16, #tpu.memory_space<vmem>>, %arg3: memref<48x128xbf16, #tpu.memory_space<vmem>>, %arg4: memref<128x128xf32, #tpu.memory_space<vmem>>, %arg5: memref<1x128xf32, #tpu.memory_space<vmem>>, %arg6: memref<128x128xf32, #tpu.memory_space<vmem>>, %arg7: memref<1x128xf32, #tpu.memory_space<vmem>>, %arg8: memref<2x128xf32, #tpu.memory_space<vmem>>, %arg9: memref<2x128xf32, #tpu.memory_space<vmem>>, %arg10: memref<2x128xf32, #tpu.memory_space<vmem>>) attributes {dimension_semantics = [#tpu.dimension_semantics<parallel>, #tpu.dimension_semantics<arbitrary>], iteration_bounds = array<i64: 1, 1>, scalar_prefetch = 0 : i64, scratch_operands = 1 : i64, tpu.core_type = #tpu.core_type<tc>, window_params = [{transform_indices = @transform_0, window_bounds = array<i64: 2, 256, 48>}, {pipeline_mode = #tpu.pipeline_mode<synchronous>, transform_indices = @transform_1, window_bounds = array<i64: 48, 128>}, {pipeline_mode = #tpu.pipeline_mode<synchronous>, transform_indices = @transform_2, window_bounds = array<i64: 128, 128>}, {pipeline_mode = #tpu.pipeline_mode<synchronous>, transform_indices = @transform_3, window_bounds = array<i64: 1, 128>}, {pipeline_mode = #tpu.pipeline_mode<synchronous>, transform_indices = @transform_4, window_bounds = array<i64: 128, 128>}, {pipeline_mode = #tpu.pipeline_mode<synchronous>, transform_indices = @transform_5, window_bounds = array<i64: 1, 128>}, {transform_indices = @transform_6, window_bounds = array<i64: 2, 128>}, {transform_indices = @transform_7, window_bounds = array<i64: 2, 128>}]} {
    %c0_i32 = arith.constant 0 : i32
    %0 = arith.cmpi eq, %arg1, %c0_i32 : i32
    %1 = arith.extui %0 : i1 to i32
    %c0_i32_0 = arith.constant 0 : i32
    %2 = arith.cmpi ne, %1, %c0_i32_0 : i32
    scf.if %2 {
      %cst_13 = arith.constant 0.000000e+00 : f32
      %17 = vector.broadcast %cst_13 : f32 to vector<2x128xf32>
      %c0_14 = arith.constant 0 : index
      %c0_15 = arith.constant 0 : index
      %18 = vector.load %arg10[%c0_14, %c0_15] : memref<2x128xf32, #tpu.memory_space<vmem>>, vector<2x128xf32>
      tpu.vector_store %arg10[%c0_14, %c0_15], %17 {strides = array<i32>} : memref<2x128xf32, #tpu.memory_space<vmem>>, vector<2x128xf32>,
    } else {
    }
    %c0 = arith.constant 0 : index
    %c0_1 = arith.constant 0 : index
    %c0_2 = arith.constant 0 : index
    %3 = vector.load %arg2[%c0, %c0_1, %c0_2] : memref<2x256x48xbf16, #tpu.memory_space<vmem>>, vector<2x256x48xbf16>
    %4 = vector.shape_cast %3 : vector<2x256x48xbf16> to vector<512x48xbf16>
    %c0_3 = arith.constant 0 : index
    %c0_4 = arith.constant 0 : index
    %5 = vector.load %arg3[%c0_3, %c0_4] : memref<48x128xbf16, #tpu.memory_space<vmem>>, vector<48x128xbf16>
    %cst = arith.constant dense<0.000000e+00> : vector<512x128xf32>
    %6 = tpu.matmul %4, %5, %cst {dimension_numbers = #tpu.dot_dimension_numbers<[1], [0], [0], [1], [0, 0, 1, 1], [], []>} : vector<512x48xbf16>, vector<48x128xbf16>, vector<512x128xf32> -> vector<512x128xf32>
    %cst_5 = arith.constant 0.000000e+00 : f32
    %7 = vector.broadcast %cst_5 : f32 to vector<512x128xf32>
    %8 = arith.maximumf %6, %7 : vector<512x128xf32>
    %c0_6 = arith.constant 0 : index
    %c0_7 = arith.constant 0 : index
    %9 = vector.load %arg10[%c0_6, %c0_7] : memref<2x128xf32, #tpu.memory_space<vmem>>, vector<2x128xf32>
    %10 = vector.shape_cast %8 : vector<512x128xf32> to vector<2x256x128xf32>
    %cst_8 = arith.constant dense<0.000000e+00> : vector<2x128xf32>
    %11 = vector.multi_reduction <add>, %10, %cst_8 [1] : vector<2x256x128xf32> to vector<2x128xf32>
    %12 = arith.addf %9, %11 : vector<2x128xf32>
    %c0_9 = arith.constant 0 : index
    %c0_10 = arith.constant 0 : index
    %13 = vector.load %arg10[%c0_9, %c0_10] : memref<2x128xf32, #tpu.memory_space<vmem>>, vector<2x128xf32>
    tpu.vector_store %arg10[%c0_9, %c0_10], %12 {strides = array<i32>} : memref<2x128xf32, #tpu.memory_space<vmem>>, vector<2x128xf32>,
    %c0_i32_11 = arith.constant 0 : i32
    %14 = arith.cmpi eq, %arg1, %c0_i32_11 : i32
    %15 = arith.extui %14 : i1 to i32
    %c0_i32_12 = arith.constant 0 : i32
    %16 = arith.cmpi ne, %15, %c0_i32_12 : i32
    scf.if %16 {
      %c0_13 = arith.constant 0 : index
      %c0_14 = arith.constant 0 : index
      %17 = vector.load %arg10[%c0_13, %c0_14] : memref<2x128xf32, #tpu.memory_space<vmem>>, vector<2x128xf32>
      %cst_15 = arith.constant 3.906250e-03 : f32
      %18 = vector.broadcast %cst_15 : f32 to vector<2x128xf32>
      %19 = arith.mulf %17, %18 : vector<2x128xf32>
      %c0_16 = arith.constant 0 : index
      %c0_17 = arith.constant 0 : index
      %20 = vector.load %arg4[%c0_16, %c0_17] : memref<128x128xf32, #tpu.memory_space<vmem>>, vector<128x128xf32>
      %cst_18 = arith.constant dense<0.000000e+00> : vector<2x128xf32>
      %21 = tpu.matmul %19, %20, %cst_18 {dimension_numbers = #tpu.dot_dimension_numbers<[1], [0], [0], [1], [0, 0, 1, 1], [], []>} : vector<2x128xf32>, vector<128x128xf32>, vector<2x128xf32> -> vector<2x128xf32>
      %c0_19 = arith.constant 0 : index
      %c0_20 = arith.constant 0 : index
      %22 = vector.load %arg5[%c0_19, %c0_20] : memref<1x128xf32, #tpu.memory_space<vmem>>, vector<1x128xf32>
      %23 = vector.broadcast %22 : vector<1x128xf32> to vector<2x128xf32>
      %24 = arith.addf %21, %23 : vector<2x128xf32>
      %cst_21 = arith.constant 0.000000e+00 : f32
      %25 = vector.broadcast %cst_21 : f32 to vector<2x128xf32>
      %26 = arith.maximumf %24, %25 : vector<2x128xf32>
      %c0_22 = arith.constant 0 : index
      %c0_23 = arith.constant 0 : index
      %27 = vector.load %arg8[%c0_22, %c0_23] : memref<2x128xf32, #tpu.memory_space<vmem>>, vector<2x128xf32>
      tpu.vector_store %arg8[%c0_22, %c0_23], %26 {strides = array<i32>} : memref<2x128xf32, #tpu.memory_space<vmem>>, vector<2x128xf32>,
      %c0_24 = arith.constant 0 : index
      %c0_25 = arith.constant 0 : index
      %28 = vector.load %arg6[%c0_24, %c0_25] : memref<128x128xf32, #tpu.memory_space<vmem>>, vector<128x128xf32>
      %cst_26 = arith.constant dense<0.000000e+00> : vector<2x128xf32>
      %29 = tpu.matmul %26, %28, %cst_26 {dimension_numbers = #tpu.dot_dimension_numbers<[1], [0], [0], [1], [0, 0, 1, 1], [], []>} : vector<2x128xf32>, vector<128x128xf32>, vector<2x128xf32> -> vector<2x128xf32>
      %c0_27 = arith.constant 0 : index
      %c0_28 = arith.constant 0 : index
      %30 = vector.load %arg7[%c0_27, %c0_28] : memref<1x128xf32, #tpu.memory_space<vmem>>, vector<1x128xf32>
      %31 = vector.broadcast %30 : vector<1x128xf32> to vector<2x128xf32>
      %32 = arith.addf %29, %31 : vector<2x128xf32>
      %c0_29 = arith.constant 0 : index
      %c0_30 = arith.constant 0 : index
      %33 = vector.load %arg9[%c0_29, %c0_30] : memref<2x128xf32, #tpu.memory_space<vmem>>, vector<2x128xf32>
      tpu.vector_store %arg9[%c0_29, %c0_30], %32 {strides = array<i32>} : memref<2x128xf32, #tpu.memory_space<vmem>>, vector<2x128xf32>,
    } else {
    }
    return
  }
  func.func @transform_0(%arg0: i32, %arg1: i32) -> (i32, i32, i32) {
    %c0_i32 = arith.constant 0 : i32
    %c0_i32_0 = arith.constant 0 : i32
    return %arg0, %arg1, %c0_i32 : i32, i32, i32
  }
  func.func @transform_1(%arg0: i32, %arg1: i32) -> (i32, i32) {
    %c0_i32 = arith.constant 0 : i32
    %c0_i32_0 = arith.constant 0 : i32
    %c0_i32_1 = arith.constant 0 : i32
    return %c0_i32, %c0_i32_0 : i32, i32
  }
  func.func @transform_2(%arg0: i32, %arg1: i32) -> (i32, i32) {
    %c0_i32 = arith.constant 0 : i32
    %c0_i32_0 = arith.constant 0 : i32
    %c0_i32_1 = arith.constant 0 : i32
    return %c0_i32, %c0_i32_0 : i32, i32
  }
  func.func @transform_3(%arg0: i32, %arg1: i32) -> (i32, i32) {
    %c0_i32 = arith.constant 0 : i32
    %c0_i32_0 = arith.constant 0 : i32
    %c0_i32_1 = arith.constant 0 : i32
    return %c0_i32, %c0_i32_0 : i32, i32
  }
  func.func @transform_4(%arg0: i32, %arg1: i32) -> (i32, i32) {
    %c0_i32 = arith.constant 0 : i32
    %c0_i32_0 = arith.constant 0 : i32
    %c0_i32_1 = arith.constant 0 : i32
    return %c0_i32, %c0_i32_0 : i32, i32
  }
  func.func @transform_5(%arg0: i32, %arg1: i32) -> (i32, i32) {
    %c0_i32 = arith.constant 0 : i32
    %c0_i32_0 = arith.constant 0 : i32
    %c0_i32_1 = arith.constant 0 : i32
    return %c0_i32, %c0_i32_0 : i32, i32
  }
  func.func @transform_6(%arg0: i32, %arg1: i32) -> (i32, i32) {
    %c0_i32 = arith.constant 0 : i32
    %c0_i32_0 = arith.constant 0 : i32
    return %arg0, %c0_i32 : i32, i32
  }
  func.func @transform_7(%arg0: i32, %arg1: i32) -> (i32, i32) {
    %c0_i32 = arith.constant 0 : i32
    %c0_i32_0 = arith.constant 0 : i32
    return %arg0, %c0_i32 : i32, i32
  }
}

</mosaic_0001>

<llo_original>
// kernel: simple_net_forward.1
$region0: #{simple_net_forward.1}
  #allocation0 [shape = 'u32[]', space=smem, size = 0x4, offset = 0x4, fixed_abs, tag = 'smem constant byte address 0x4 - core index']
  #allocation1 [shape = 'u32[144,128]{1,0:T(1,128)}', space=vmem, size = 0x12000, scoped, tag = 'internal scratch']
  #allocation2 [shape = 'f32[2,128]{1,0:T(2,128)}', space=vmem, size = 0x400, scoped, tag = 'scratch operand']
  %s0 = inlined_call_operand.vmem [shape: bf16[2,256,48], index: 0, kind: input, shape index: {}]
  %s1 = inlined_call_operand.vmem [shape: bf16[48,128], index: 1, kind: input, shape index: {}]
  %s2 = inlined_call_operand.vmem [shape: f32[128,128], index: 2, kind: input, shape index: {}]
  %s3 = inlined_call_operand.vmem [shape: f32[1,128], index: 3, kind: input, shape index: {}]
  %s4 = inlined_call_operand.vmem [shape: f32[128,128], index: 4, kind: input, shape index: {}]
  %s5 = inlined_call_operand.vmem [shape: f32[1,128], index: 5, kind: input, shape index: {}]
  %s6 = inlined_call_operand.hbm [shape: f32[2,128], index: 6, kind: output, shape index: {0}]
  %s7 = inlined_call_operand.vmem [shape: f32[2,128], index: 7, kind: output, shape index: {1}]
  %8 = xla_tuple %s6, %s7
  %s9 = sld [smem:[#allocation0]]
  $region50: #{simple_net_forward.1} parent=0
    _
  %s11 = ssub.s32 1, %s9
  %s12 = scalar_select 0, %s11, %s9
  $region1: #{simple_net_forward.1} parent=0
    #allocation3 [shape = 'u8[1024]{0}', space=vmem, size = 0x400, scoped, tag = 'output window, operand 0, single buffered']
    #allocation4 [shape = 's32[1]{0}', space=sflag, size = 0x4, scoped, tag = 'scoped memory for simple_net_forward.1']
    %13 = vsyncpa [#allocation4], 0
    // Predicated region
    $region2: #{simple_net_forward.1} parent=1 // pred_check
      _
    $region3: #{simple_net_forward.1} parent=1 // pred_check_branch
      %15 = sbr.rel (0) target = $region5
    $region4: #{simple_net_forward.1} parent=1 // pred_region
      _
    $region5: #{simple_net_forward.1} parent=1 // pred_fallthru
      _
    // Predicated region
    $region6: #{simple_net_forward.1} parent=1 // pred_check
      _
    $region7: #{simple_net_forward.1} parent=1 // pred_check_branch
      %17 = sbr.rel (0) target = $region9
    $region8: #{simple_net_forward.1} parent=1 // pred_region
      _
    $region9: #{simple_net_forward.1} parent=1 // pred_fallthru
      _
    // Predicated region
    $region10: #{simple_net_forward.1} parent=1 // pred_check
      _
    $region11: #{simple_net_forward.1} parent=1 // pred_check_branch
      %19 = sbr.rel (0) target = $region13
    $region12: #{simple_net_forward.1} parent=1 // pred_region
      _
    $region13: #{simple_net_forward.1} parent=1 // pred_fallthru
      _
    // Predicated region
    $region14: #{simple_net_forward.1} parent=1 // pred_check
      _
    $region15: #{simple_net_forward.1} parent=1 // pred_check_branch
      %21 = sbr.rel (0) target = $region17
    $region16: #{simple_net_forward.1} parent=1 // pred_region
      _
    $region17: #{simple_net_forward.1} parent=1 // pred_fallthru
      _
    // Predicated region
    $region18: #{simple_net_forward.1} parent=1 // pred_check
      _
    $region19: #{simple_net_forward.1} parent=1 // pred_check_branch
      %23 = sbr.rel (0) target = $region21
    $region20: #{simple_net_forward.1} parent=1 // pred_region
      _
    $region21: #{simple_net_forward.1} parent=1 // pred_fallthru
      _
    // Predicated region
    $region22: #{simple_net_forward.1} parent=1 // pred_check
      _
    $region23: #{simple_net_forward.1} parent=1 // pred_check_branch
      %25 = sbr.rel (0) target = $region25
    $region24: #{simple_net_forward.1} parent=1 // pred_region
      _
    $region25: #{simple_net_forward.1} parent=1 // pred_fallthru
      _
    %p27 = scmp.eq.s32.totalorder 0, 0
    // Predicated region
    $region26: #{simple_net_forward.1} parent=1 // pred_check
      %p28 = pneg %p27
    $region27: #{simple_net_forward.1} parent=1 // pred_check_branch
      %30 = sbr.rel (%p28) target = $region29
    $region28: #{simple_net_forward.1} parent=1 // pred_region
      %31 = vst [vmem:[#allocation2] sm:$0x3] 0.0
    $region29: #{simple_net_forward.1} parent=1 // pred_fallthru
      _
    %v32 = vld [vmem:[%s0] sm:$0xf]
    %v33 = vld [vmem:[%s0 + $0x4] sm:$0xf]
    %v34 = vld [vmem:[%s0 + $0x8] sm:$0xf]
    %v35 = vld [vmem:[%s0 + $0xc] sm:$0xf]
    %v36 = vld [vmem:[%s0 + $0x10] sm:$0xf]
    %v37 = vld [vmem:[%s0 + $0x14] sm:$0xf]
    %v38 = vld [vmem:[%s0 + $0x18] sm:$0xf]
    %v39 = vld [vmem:[%s0 + $0x1c] sm:$0xf]
    %v40 = vld [vmem:[%s0 + $0x20] sm:$0xf]
    %v41 = vld [vmem:[%s0 + $0x24] sm:$0xf]
    %v42 = vld [vmem:[%s0 + $0x28] sm:$0xf]
    %v43 = vld [vmem:[%s0 + $0x2c] sm:$0xf]
    %v44 = vld [vmem:[%s0 + $0x30] sm:$0xf]
    %v45 = vld [vmem:[%s0 + $0x34] sm:$0xf]
    %v46 = vld [vmem:[%s0 + $0x38] sm:$0xf]
    %v47 = vld [vmem:[%s0 + $0x3c] sm:$0xf]
    %v48 = vld [vmem:[%s0 + $0x40] sm:$0xf]
    %v49 = vld [vmem:[%s0 + $0x44] sm:$0xf]
    %v50 = vld [vmem:[%s0 + $0x48] sm:$0xf]
    %v51 = vld [vmem:[%s0 + $0x4c] sm:$0xf]
    %v52 = vld [vmem:[%s0 + $0x50] sm:$0xf]
    %v53 = vld [vmem:[%s0 + $0x54] sm:$0xf]
    %v54 = vld [vmem:[%s0 + $0x58] sm:$0xf]
    %v55 = vld [vmem:[%s0 + $0x5c] sm:$0xf]
    %v56 = vld [vmem:[%s0 + $0x60] sm:$0xf]
    %v57 = vld [vmem:[%s0 + $0x64] sm:$0xf]
    %v58 = vld [vmem:[%s0 + $0x68] sm:$0xf]
    %v59 = vld [vmem:[%s0 + $0x6c] sm:$0xf]
    %v60 = vld [vmem:[%s0 + $0x70] sm:$0xf]
    %v61 = vld [vmem:[%s0 + $0x74] sm:$0xf]
    %v62 = vld [vmem:[%s0 + $0x78] sm:$0xf]
    %v63 = vld [vmem:[%s0 + $0x7c] sm:$0xf]
    %v64 = vld [vmem:[%s0 + $0x80] sm:$0xf]
    %v65 = vld [vmem:[%s0 + $0x84] sm:$0xf]
    %v66 = vld [vmem:[%s0 + $0x88] sm:$0xf]
    %v67 = vld [vmem:[%s0 + $0x8c] sm:$0xf]
    %v68 = vld [vmem:[%s0 + $0x90] sm:$0xf]
    %v69 = vld [vmem:[%s0 + $0x94] sm:$0xf]
    %v70 = vld [vmem:[%s0 + $0x98] sm:$0xf]
    %v71 = vld [vmem:[%s0 + $0x9c] sm:$0xf]
    %v72 = vld [vmem:[%s0 + $0xa0] sm:$0xf]
    %v73 = vld [vmem:[%s0 + $0xa4] sm:$0xf]
    %v74 = vld [vmem:[%s0 + $0xa8] sm:$0xf]
    %v75 = vld [vmem:[%s0 + $0xac] sm:$0xf]
    %v76 = vld [vmem:[%s0 + $0xb0] sm:$0xf]
    %v77 = vld [vmem:[%s0 + $0xb4] sm:$0xf]
    %v78 = vld [vmem:[%s0 + $0xb8] sm:$0xf]
    %v79 = vld [vmem:[%s0 + $0xbc] sm:$0xf]
    %v80 = vld [vmem:[%s0 + $0xc0] sm:$0xf]
    %v81 = vld [vmem:[%s0 + $0xc4] sm:$0xf]
    %v82 = vld [vmem:[%s0 + $0xc8] sm:$0xf]
    %v83 = vld [vmem:[%s0 + $0xcc] sm:$0xf]
    %v84 = vld [vmem:[%s0 + $0xd0] sm:$0xf]
    %v85 = vld [vmem:[%s0 + $0xd4] sm:$0xf]
    %v86 = vld [vmem:[%s0 + $0xd8] sm:$0xf]
    %v87 = vld [vmem:[%s0 + $0xdc] sm:$0xf]
    %v88 = vld [vmem:[%s0 + $0xe0] sm:$0xf]
    %v89 = vld [vmem:[%s0 + $0xe4] sm:$0xf]
    %v90 = vld [vmem:[%s0 + $0xe8] sm:$0xf]
    %v91 = vld [vmem:[%s0 + $0xec] sm:$0xf]
    %v92 = vld [vmem:[%s0 + $0xf0] sm:$0xf]
    %v93 = vld [vmem:[%s0 + $0xf4] sm:$0xf]
    %v94 = vld [vmem:[%s0 + $0xf8] sm:$0xf]
    %v95 = vld [vmem:[%s0 + $0xfc] sm:$0xf]
    %v96 = vld [vmem:[%s1] sm:$0xf]
    %v97 = vld [vmem:[%s1 + $0x4] sm:$0xf]
    %v98 = vld [vmem:[%s1 + $0x8] sm:$0xf]
    %v99 = vld [vmem:[%s1 + $0xc] sm:$0xf]
    %v100 = vld [vmem:[%s1 + $0x10] sm:$0xf]
    %v101 = vld [vmem:[%s1 + $0x14] sm:$0xf]
    %v166 = vunpack.c.l.b16 %v32
    %v167 = vunpack.c.l.b16 %v33
    %v168 = vunpack.c.l.b16 %v34
    %v169 = vunpack.c.l.b16 %v35
    %v170 = vunpack.c.l.b16 %v36
    %v171 = vunpack.c.l.b16 %v37
    %v172 = vunpack.c.l.b16 %v38
    %v173 = vunpack.c.l.b16 %v39
    %v174 = vunpack.c.l.b16 %v40
    %v175 = vunpack.c.l.b16 %v41
    %v176 = vunpack.c.l.b16 %v42
    %v177 = vunpack.c.l.b16 %v43
    %v178 = vunpack.c.l.b16 %v44
    %v179 = vunpack.c.l.b16 %v45
    %v180 = vunpack.c.l.b16 %v46
    %v181 = vunpack.c.l.b16 %v47
    %v182 = vunpack.c.l.b16 %v48
    %v183 = vunpack.c.l.b16 %v49
    %v184 = vunpack.c.l.b16 %v50
    %v185 = vunpack.c.l.b16 %v51
    %v186 = vunpack.c.l.b16 %v52
    %v187 = vunpack.c.l.b16 %v53
    %v188 = vunpack.c.l.b16 %v54
    %v189 = vunpack.c.l.b16 %v55
    %v190 = vunpack.c.l.b16 %v56
    %v191 = vunpack.c.l.b16 %v57
    %v192 = vunpack.c.l.b16 %v58
    %v193 = vunpack.c.l.b16 %v59
    %v194 = vunpack.c.l.b16 %v60
    %v195 = vunpack.c.l.b16 %v61
    %v196 = vunpack.c.l.b16 %v62
    %v197 = vunpack.c.l.b16 %v63
    %v198 = vunpack.c.l.b16 %v64
    %v199 = vunpack.c.l.b16 %v65
    %v200 = vunpack.c.l.b16 %v66
    %v201 = vunpack.c.l.b16 %v67
    %v202 = vunpack.c.l.b16 %v68
    %v203 = vunpack.c.l.b16 %v69
    %v204 = vunpack.c.l.b16 %v70
    %v205 = vunpack.c.l.b16 %v71
    %v206 = vunpack.c.l.b16 %v72
    %v207 = vunpack.c.l.b16 %v73
    %v208 = vunpack.c.l.b16 %v74
    %v209 = vunpack.c.l.b16 %v75
    %v210 = vunpack.c.l.b16 %v76
    %v211 = vunpack.c.l.b16 %v77
    %v212 = vunpack.c.l.b16 %v78
    %v213 = vunpack.c.l.b16 %v79
    %v214 = vunpack.c.l.b16 %v80
    %v215 = vunpack.c.l.b16 %v81
    %v216 = vunpack.c.l.b16 %v82
    %v217 = vunpack.c.l.b16 %v83
    %v218 = vunpack.c.l.b16 %v84
    %v219 = vunpack.c.l.b16 %v85
    %v220 = vunpack.c.l.b16 %v86
    %v221 = vunpack.c.l.b16 %v87
    %v222 = vunpack.c.l.b16 %v88
    %v223 = vunpack.c.l.b16 %v89
    %v224 = vunpack.c.l.b16 %v90
    %v225 = vunpack.c.l.b16 %v91
    %v226 = vunpack.c.l.b16 %v92
    %v227 = vunpack.c.l.b16 %v93
    %v228 = vunpack.c.l.b16 %v94
    %v229 = vunpack.c.l.b16 %v95
    %v230 = vpack.c.b16 %v167, %v166
    %v231 = vpack.c.b16 %v169, %v168
    %v232 = vpack.c.b16 %v171, %v170
    %v233 = vpack.c.b16 %v173, %v172
    %v234 = vpack.c.b16 %v175, %v174
    %v235 = vpack.c.b16 %v177, %v176
    %v236 = vpack.c.b16 %v179, %v178
    %v237 = vpack.c.b16 %v181, %v180
    %v238 = vpack.c.b16 %v183, %v182
    %v239 = vpack.c.b16 %v185, %v184
    %v240 = vpack.c.b16 %v187, %v186
    %v241 = vpack.c.b16 %v189, %v188
    %v242 = vpack.c.b16 %v191, %v190
    %v243 = vpack.c.b16 %v193, %v192
    %v244 = vpack.c.b16 %v195, %v194
    %v245 = vpack.c.b16 %v197, %v196
    %v246 = vpack.c.b16 %v199, %v198
    %v247 = vpack.c.b16 %v201, %v200
    %v248 = vpack.c.b16 %v203, %v202
    %v249 = vpack.c.b16 %v205, %v204
    %v250 = vpack.c.b16 %v207, %v206
    %v251 = vpack.c.b16 %v209, %v208
    %v252 = vpack.c.b16 %v211, %v210
    %v253 = vpack.c.b16 %v213, %v212
    %v254 = vpack.c.b16 %v215, %v214
    %v255 = vpack.c.b16 %v217, %v216
    %v256 = vpack.c.b16 %v219, %v218
    %v257 = vpack.c.b16 %v221, %v220
    %v258 = vpack.c.b16 %v223, %v222
    %v259 = vpack.c.b16 %v225, %v224
    %v260 = vpack.c.b16 %v227, %v226
    %v261 = vpack.c.b16 %v229, %v228
    %v268 = vunpack.c.l.b16 %v96
    %v269 = vunpack.c.l.b16 %v97
    %v270 = vunpack.c.l.b16 %v98
    %v271 = vunpack.c.l.b16 %v99
    %v272 = vunpack.c.l.b16 %v100
    %v273 = vunpack.c.l.b16 %v101
    %v274 = vpack.c.b16 %v269, %v268
    %v275 = vpack.c.b16 %v271, %v270
    %v276 = vpack.c.b16 %v273, %v272
    %vm280 = vcmask 392192
    %v282 = vsel %vm280, %v230, 0
    %v285 = vsel %vm280, %v231, 0
    %v288 = vsel %vm280, %v232, 0
    %v291 = vsel %vm280, %v233, 0
    %v294 = vsel %vm280, %v234, 0
    %v297 = vsel %vm280, %v235, 0
    %v300 = vsel %vm280, %v236, 0
    %v303 = vsel %vm280, %v237, 0
    %v306 = vsel %vm280, %v238, 0
    %v309 = vsel %vm280, %v239, 0
    %v312 = vsel %vm280, %v240, 0
    %v315 = vsel %vm280, %v241, 0
    %v318 = vsel %vm280, %v242, 0
    %v321 = vsel %vm280, %v243, 0
    %v324 = vsel %vm280, %v244, 0
    %v327 = vsel %vm280, %v245, 0
    %v330 = vsel %vm280, %v246, 0
    %v333 = vsel %vm280, %v247, 0
    %v336 = vsel %vm280, %v248, 0
    %v339 = vsel %vm280, %v249, 0
    %v342 = vsel %vm280, %v250, 0
    %v345 = vsel %vm280, %v251, 0
    %v348 = vsel %vm280, %v252, 0
    %v351 = vsel %vm280, %v253, 0
    %v354 = vsel %vm280, %v254, 0
    %v357 = vsel %vm280, %v255, 0
    %v360 = vsel %vm280, %v256, 0
    %v363 = vsel %vm280, %v257, 0
    %v366 = vsel %vm280, %v258, 0
    %v369 = vsel %vm280, %v259, 0
    %v372 = vsel %vm280, %v260, 0
    %v375 = vsel %vm280, %v261, 0
    %377 = vmatprep.subr.bf16.mxu0 0
    %378 = vmatpush1.bf16.msra.mxu0 %v274
    %379 = vmatprep.subr.bf16.mxu0 0
    %380 = vmatpush1.bf16.msra.mxu0 %v275
    %381 = vmatprep.subr.bf16.mxu0 0
    %382 = vmatpush1.bf16.msra.mxu0 %v276
    %383 = vmatprep.subr.bf16.mxu0 0
    %384 = vmatpush1.bf16.msra.mxu0 0
    %385 = vmatprep.subr.bf16.mxu0 0
    %386 = vmatpush1.bf16.msra.mxu0 0
    %387 = vmatprep.subr.bf16.mxu0 0
    %388 = vmatpush1.bf16.msra.mxu0 0
    %389 = vmatprep.subr.bf16.mxu0 0
    %390 = vmatpush1.bf16.msra.mxu0 0
    %391 = vmatprep.subr.bf16.mxu0 0
    %392 = vmatpush1.bf16.msra.mxu0 0
    %393 = vmatprep.subr.bf16.mxu0 0
    %394 = vmatpush1.bf16.msra.mxu0 0
    %395 = vmatprep.subr.bf16.mxu0 0
    %396 = vmatpush1.bf16.msra.mxu0 0
    %397 = vmatprep.subr.bf16.mxu0 0
    %398 = vmatpush1.bf16.msra.mxu0 0
    %399 = vmatprep.subr.bf16.mxu0 0
    %400 = vmatpush1.bf16.msra.mxu0 0
    %401 = vmatprep.subr.bf16.mxu0 0
    %402 = vmatpush1.bf16.msra.mxu0 0
    %403 = vmatprep.subr.bf16.mxu0 0
    %404 = vmatpush1.bf16.msra.mxu0 0
    %405 = vmatprep.subr.bf16.mxu0 0
    %406 = vmatpush1.bf16.msra.mxu0 0
    %407 = vmatprep.subr.bf16.mxu0 0
    %408 = vmatpush1.bf16.msra.mxu0 0
    %409 = vmatprep.mubr.bf16.mxu0 0
    %410 = vmatmul.mubr.bf16.gmra.mrb[0].mxu0 %v282
    %v411 = vpop.f32.mrb[0].mxu0
    %v412 = vadd.f32 0.0, %v411
    %v413 = vpop.f32.mrb[0].mxu0
    %v414 = vpop.f32.mrb[0].mxu0
    %v415 = vadd.f32 0.0, %v414
    %v416 = vpop.f32.mrb[0].mxu0
    %417 = vmatprep.mubr.bf16.mxu0 0
    %418 = vmatmul.mubr.bf16.gmra.mrb[0].mxu0 %v285
    %v419 = vpop.f32.mrb[0].mxu0
    %v420 = vadd.f32 0.0, %v419
    %v421 = vpop.f32.mrb[0].mxu0
    %v422 = vpop.f32.mrb[0].mxu0
    %v423 = vadd.f32 0.0, %v422
    %v424 = vpop.f32.mrb[0].mxu0
    %425 = vmatprep.mubr.bf16.mxu0 0
    %426 = vmatmul.mubr.bf16.gmra.mrb[0].mxu0 %v288
    %v427 = vpop.f32.mrb[0].mxu0
    %v428 = vadd.f32 0.0, %v427
    %v429 = vpop.f32.mrb[0].mxu0
    %v430 = vpop.f32.mrb[0].mxu0
    %v431 = vadd.f32 0.0, %v430
    %v432 = vpop.f32.mrb[0].mxu0
    %433 = vmatprep.mubr.bf16.mxu0 0
    %434 = vmatmul.mubr.bf16.gmra.mrb[0].mxu0 %v291
    %v435 = vpop.f32.mrb[0].mxu0
    %v436 = vadd.f32 0.0, %v435
    %v437 = vpop.f32.mrb[0].mxu0
    %v438 = vpop.f32.mrb[0].mxu0
    %v439 = vadd.f32 0.0, %v438
    %v440 = vpop.f32.mrb[0].mxu0
    %441 = vmatprep.mubr.bf16.mxu0 0
    %442 = vmatmul.mubr.bf16.gmra.mrb[0].mxu0 %v294
    %v443 = vpop.f32.mrb[0].mxu0
    %v444 = vadd.f32 0.0, %v443
    %v445 = vpop.f32.mrb[0].mxu0
    %v446 = vpop.f32.mrb[0].mxu0
    %v447 = vadd.f32 0.0, %v446
    %v448 = vpop.f32.mrb[0].mxu0
    %449 = vmatprep.mubr.bf16.mxu0 0
    %450 = vmatmul.mubr.bf16.gmra.mrb[0].mxu0 %v297
    %v451 = vpop.f32.mrb[0].mxu0
    %v452 = vadd.f32 0.0, %v451
    %v453 = vpop.f32.mrb[0].mxu0
    %v454 = vpop.f32.mrb[0].mxu0
    %v455 = vadd.f32 0.0, %v454
    %v456 = vpop.f32.mrb[0].mxu0
    %457 = vmatprep.mubr.bf16.mxu0 0
    %458 = vmatmul.mubr.bf16.gmra.mrb[0].mxu0 %v300
    %v459 = vpop.f32.mrb[0].mxu0
    %v460 = vadd.f32 0.0, %v459
    %v461 = vpop.f32.mrb[0].mxu0
    %v462 = vpop.f32.mrb[0].mxu0
    %v463 = vadd.f32 0.0, %v462
    %v464 = vpop.f32.mrb[0].mxu0
    %465 = vmatprep.mubr.bf16.mxu0 0
    %466 = vmatmul.mubr.bf16.gmra.mrb[0].mxu0 %v303
    %v467 = vpop.f32.mrb[0].mxu0
    %v468 = vadd.f32 0.0, %v467
    %v469 = vpop.f32.mrb[0].mxu0
    %v470 = vpop.f32.mrb[0].mxu0
    %v471 = vadd.f32 0.0, %v470
    %v472 = vpop.f32.mrb[0].mxu0
    %473 = vmatprep.mubr.bf16.mxu0 0
    %474 = vmatmul.mubr.bf16.gmra.mrb[0].mxu0 %v306
    %v475 = vpop.f32.mrb[0].mxu0
    %v476 = vadd.f32 0.0, %v475
    %v477 = vpop.f32.mrb[0].mxu0
    %v478 = vpop.f32.mrb[0].mxu0
    %v479 = vadd.f32 0.0, %v478
    %v480 = vpop.f32.mrb[0].mxu0
    %481 = vmatprep.mubr.bf16.mxu0 0
    %482 = vmatmul.mubr.bf16.gmra.mrb[0].mxu0 %v309
    %v483 = vpop.f32.mrb[0].mxu0
    %v484 = vadd.f32 0.0, %v483
    %v485 = vpop.f32.mrb[0].mxu0
    %v486 = vpop.f32.mrb[0].mxu0
    %v487 = vadd.f32 0.0, %v486
    %v488 = vpop.f32.mrb[0].mxu0
    %489 = vmatprep.mubr.bf16.mxu0 0
    %490 = vmatmul.mubr.bf16.gmra.mrb[0].mxu0 %v312
    %v491 = vpop.f32.mrb[0].mxu0
    %v492 = vadd.f32 0.0, %v491
    %v493 = vpop.f32.mrb[0].mxu0
    %v494 = vpop.f32.mrb[0].mxu0
    %v495 = vadd.f32 0.0, %v494
    %v496 = vpop.f32.mrb[0].mxu0
    %497 = vmatprep.mubr.bf16.mxu0 0
    %498 = vmatmul.mubr.bf16.gmra.mrb[0].mxu0 %v315
    %v499 = vpop.f32.mrb[0].mxu0
    %v500 = vadd.f32 0.0, %v499
    %v501 = vpop.f32.mrb[0].mxu0
    %v502 = vpop.f32.mrb[0].mxu0
    %v503 = vadd.f32 0.0, %v502
    %v504 = vpop.f32.mrb[0].mxu0
    %505 = vmatprep.mubr.bf16.mxu0 0
    %506 = vmatmul.mubr.bf16.gmra.mrb[0].mxu0 %v318
    %v507 = vpop.f32.mrb[0].mxu0
    %v508 = vadd.f32 0.0, %v507
    %v509 = vpop.f32.mrb[0].mxu0
    %v510 = vpop.f32.mrb[0].mxu0
    %v511 = vadd.f32 0.0, %v510
    %v512 = vpop.f32.mrb[0].mxu0
    %513 = vmatprep.mubr.bf16.mxu0 0
    %514 = vmatmul.mubr.bf16.gmra.mrb[0].mxu0 %v321
    %v515 = vpop.f32.mrb[0].mxu0
    %v516 = vadd.f32 0.0, %v515
    %v517 = vpop.f32.mrb[0].mxu0
    %v518 = vpop.f32.mrb[0].mxu0
    %v519 = vadd.f32 0.0, %v518
    %v520 = vpop.f32.mrb[0].mxu0
    %521 = vmatprep.mubr.bf16.mxu0 0
    %522 = vmatmul.mubr.bf16.gmra.mrb[0].mxu0 %v324
    %v523 = vpop.f32.mrb[0].mxu0
    %v524 = vadd.f32 0.0, %v523
    %v525 = vpop.f32.mrb[0].mxu0
    %v526 = vpop.f32.mrb[0].mxu0
    %v527 = vadd.f32 0.0, %v526
    %v528 = vpop.f32.mrb[0].mxu0
    %529 = vmatprep.mubr.bf16.mxu0 0
    %530 = vmatmul.mubr.bf16.gmra.mrb[0].mxu0 %v327
    %v531 = vpop.f32.mrb[0].mxu0
    %v532 = vadd.f32 0.0, %v531
    %v533 = vpop.f32.mrb[0].mxu0
    %v534 = vpop.f32.mrb[0].mxu0
    %v535 = vadd.f32 0.0, %v534
    %v536 = vpop.f32.mrb[0].mxu0
    %537 = vmatprep.mubr.bf16.mxu0 0
    %538 = vmatmul.mubr.bf16.gmra.mrb[0].mxu0 %v330
    %v539 = vpop.f32.mrb[0].mxu0
    %v540 = vadd.f32 0.0, %v539
    %v541 = vpop.f32.mrb[0].mxu0
    %v542 = vpop.f32.mrb[0].mxu0
    %v543 = vadd.f32 0.0, %v542
    %v544 = vpop.f32.mrb[0].mxu0
    %545 = vmatprep.mubr.bf16.mxu0 0
    %546 = vmatmul.mubr.bf16.gmra.mrb[0].mxu0 %v333
    %v547 = vpop.f32.mrb[0].mxu0
    %v548 = vadd.f32 0.0, %v547
    %v549 = vpop.f32.mrb[0].mxu0
    %v550 = vpop.f32.mrb[0].mxu0
    %v551 = vadd.f32 0.0, %v550
    %v552 = vpop.f32.mrb[0].mxu0
    %553 = vmatprep.mubr.bf16.mxu0 0
    %554 = vmatmul.mubr.bf16.gmra.mrb[0].mxu0 %v336
    %v555 = vpop.f32.mrb[0].mxu0
    %v556 = vadd.f32 0.0, %v555
    %v557 = vpop.f32.mrb[0].mxu0
    %v558 = vpop.f32.mrb[0].mxu0
    %v559 = vadd.f32 0.0, %v558
    %v560 = vpop.f32.mrb[0].mxu0
    %561 = vmatprep.mubr.bf16.mxu0 0
    %562 = vmatmul.mubr.bf16.gmra.mrb[0].mxu0 %v339
    %v563 = vpop.f32.mrb[0].mxu0
    %v564 = vadd.f32 0.0, %v563
    %v565 = vpop.f32.mrb[0].mxu0
    %v566 = vpop.f32.mrb[0].mxu0
    %v567 = vadd.f32 0.0, %v566
    %v568 = vpop.f32.mrb[0].mxu0
    %569 = vmatprep.mubr.bf16.mxu0 0
    %570 = vmatmul.mubr.bf16.gmra.mrb[0].mxu0 %v342
    %v571 = vpop.f32.mrb[0].mxu0
    %v572 = vadd.f32 0.0, %v571
    %v573 = vpop.f32.mrb[0].mxu0
    %v574 = vpop.f32.mrb[0].mxu0
    %v575 = vadd.f32 0.0, %v574
    %v576 = vpop.f32.mrb[0].mxu0
    %577 = vmatprep.mubr.bf16.mxu0 0
    %578 = vmatmul.mubr.bf16.gmra.mrb[0].mxu0 %v345
    %v579 = vpop.f32.mrb[0].mxu0
    %v580 = vadd.f32 0.0, %v579
    %v581 = vpop.f32.mrb[0].mxu0
    %v582 = vpop.f32.mrb[0].mxu0
    %v583 = vadd.f32 0.0, %v582
    %v584 = vpop.f32.mrb[0].mxu0
    %585 = vmatprep.mubr.bf16.mxu0 0
    %586 = vmatmul.mubr.bf16.gmra.mrb[0].mxu0 %v348
    %v587 = vpop.f32.mrb[0].mxu0
    %v588 = vadd.f32 0.0, %v587
    %v589 = vpop.f32.mrb[0].mxu0
    %v590 = vpop.f32.mrb[0].mxu0
    %v591 = vadd.f32 0.0, %v590
    %v592 = vpop.f32.mrb[0].mxu0
    %593 = vmatprep.mubr.bf16.mxu0 0
    %594 = vmatmul.mubr.bf16.gmra.mrb[0].mxu0 %v351
    %v595 = vpop.f32.mrb[0].mxu0
    %v596 = vadd.f32 0.0, %v595
    %v597 = vpop.f32.mrb[0].mxu0
    %v598 = vpop.f32.mrb[0].mxu0
    %v599 = vadd.f32 0.0, %v598
    %v600 = vpop.f32.mrb[0].mxu0
    %601 = vmatprep.mubr.bf16.mxu0 0
    %602 = vmatmul.mubr.bf16.gmra.mrb[0].mxu0 %v354
    %v603 = vpop.f32.mrb[0].mxu0
    %v604 = vadd.f32 0.0, %v603
    %v605 = vpop.f32.mrb[0].mxu0
    %v606 = vpop.f32.mrb[0].mxu0
    %v607 = vadd.f32 0.0, %v606
    %v608 = vpop.f32.mrb[0].mxu0
    %609 = vmatprep.mubr.bf16.mxu0 0
    %610 = vmatmul.mubr.bf16.gmra.mrb[0].mxu0 %v357
    %v611 = vpop.f32.mrb[0].mxu0
    %v612 = vadd.f32 0.0, %v611
    %v613 = vpop.f32.mrb[0].mxu0
    %v614 = vpop.f32.mrb[0].mxu0
    %v615 = vadd.f32 0.0, %v614
    %v616 = vpop.f32.mrb[0].mxu0
    %617 = vmatprep.mubr.bf16.mxu0 0
    %618 = vmatmul.mubr.bf16.gmra.mrb[0].mxu0 %v360
    %v619 = vpop.f32.mrb[0].mxu0
    %v620 = vadd.f32 0.0, %v619
    %v621 = vpop.f32.mrb[0].mxu0
    %v622 = vpop.f32.mrb[0].mxu0
    %v623 = vadd.f32 0.0, %v622
    %v624 = vpop.f32.mrb[0].mxu0
    %625 = vmatprep.mubr.bf16.mxu0 0
    %626 = vmatmul.mubr.bf16.gmra.mrb[0].mxu0 %v363
    %v627 = vpop.f32.mrb[0].mxu0
    %v628 = vadd.f32 0.0, %v627
    %v629 = vpop.f32.mrb[0].mxu0
    %v630 = vpop.f32.mrb[0].mxu0
    %v631 = vadd.f32 0.0, %v630
    %v632 = vpop.f32.mrb[0].mxu0
    %633 = vmatprep.mubr.bf16.mxu0 0
    %634 = vmatmul.mubr.bf16.gmra.mrb[0].mxu0 %v366
    %v635 = vpop.f32.mrb[0].mxu0
    %v636 = vadd.f32 0.0, %v635
    %v637 = vpop.f32.mrb[0].mxu0
    %v638 = vpop.f32.mrb[0].mxu0
    %v639 = vadd.f32 0.0, %v638
    %v640 = vpop.f32.mrb[0].mxu0
    %641 = vmatprep.mubr.bf16.mxu0 0
    %642 = vmatmul.mubr.bf16.gmra.mrb[0].mxu0 %v369
    %v643 = vpop.f32.mrb[0].mxu0
    %v644 = vadd.f32 0.0, %v643
    %v645 = vpop.f32.mrb[0].mxu0
    %v646 = vpop.f32.mrb[0].mxu0
    %v647 = vadd.f32 0.0, %v646
    %v648 = vpop.f32.mrb[0].mxu0
    %649 = vmatprep.mubr.bf16.mxu0 0
    %650 = vmatmul.mubr.bf16.gmra.mrb[0].mxu0 %v372
    %v651 = vpop.f32.mrb[0].mxu0
    %v652 = vadd.f32 0.0, %v651
    %v653 = vpop.f32.mrb[0].mxu0
    %v654 = vpop.f32.mrb[0].mxu0
    %v655 = vadd.f32 0.0, %v654
    %v656 = vpop.f32.mrb[0].mxu0
    %657 = vmatprep.mubr.bf16.mxu0 0
    %658 = vmatmul.mubr.bf16.gmra.mrb[0].mxu0 %v375
    %v659 = vpop.f32.mrb[0].mxu0
    %v660 = vadd.f32 0.0, %v659
    %v661 = vpop.f32.mrb[0].mxu0
    %v662 = vpop.f32.mrb[0].mxu0
    %v663 = vadd.f32 0.0, %v662
    %v664 = vpop.f32.mrb[0].mxu0
    %665 = vdwg.mxu0
    %v666 = vmax.f32 %v412, 0.0
    %v667 = vmax.f32 %v415, 0.0
    %v668 = vmax.f32 %v420, 0.0
    %v669 = vmax.f32 %v423, 0.0
    %v670 = vmax.f32 %v428, 0.0
    %v671 = vmax.f32 %v431, 0.0
    %v672 = vmax.f32 %v436, 0.0
    %v673 = vmax.f32 %v439, 0.0
    %v674 = vmax.f32 %v444, 0.0
    %v675 = vmax.f32 %v447, 0.0
    %v676 = vmax.f32 %v452, 0.0
    %v677 = vmax.f32 %v455, 0.0
    %v678 = vmax.f32 %v460, 0.0
    %v679 = vmax.f32 %v463, 0.0
    %v680 = vmax.f32 %v468, 0.0
    %v681 = vmax.f32 %v471, 0.0
    %v682 = vmax.f32 %v476, 0.0
    %v683 = vmax.f32 %v479, 0.0
    %v684 = vmax.f32 %v484, 0.0
    %v685 = vmax.f32 %v487, 0.0
    %v686 = vmax.f32 %v492, 0.0
    %v687 = vmax.f32 %v495, 0.0
    %v688 = vmax.f32 %v500, 0.0
    %v689 = vmax.f32 %v503, 0.0
    %v690 = vmax.f32 %v508, 0.0
    %v691 = vmax.f32 %v511, 0.0
    %v692 = vmax.f32 %v516, 0.0
    %v693 = vmax.f32 %v519, 0.0
    %v694 = vmax.f32 %v524, 0.0
    %v695 = vmax.f32 %v527, 0.0
    %v696 = vmax.f32 %v532, 0.0
    %v697 = vmax.f32 %v535, 0.0
    %v698 = vmax.f32 %v540, 0.0
    %v699 = vmax.f32 %v543, 0.0
    %v700 = vmax.f32 %v548, 0.0
    %v701 = vmax.f32 %v551, 0.0
    %v702 = vmax.f32 %v556, 0.0
    %v703 = vmax.f32 %v559, 0.0
    %v704 = vmax.f32 %v564, 0.0
    %v705 = vmax.f32 %v567, 0.0
    %v706 = vmax.f32 %v572, 0.0
    %v707 = vmax.f32 %v575, 0.0
    %v708 = vmax.f32 %v580, 0.0
    %v709 = vmax.f32 %v583, 0.0
    %v710 = vmax.f32 %v588, 0.0
    %v711 = vmax.f32 %v591, 0.0
    %v712 = vmax.f32 %v596, 0.0
    %v713 = vmax.f32 %v599, 0.0
    %v714 = vmax.f32 %v604, 0.0
    %v715 = vmax.f32 %v607, 0.0
    %v716 = vmax.f32 %v612, 0.0
    %v717 = vmax.f32 %v615, 0.0
    %v718 = vmax.f32 %v620, 0.0
    %v719 = vmax.f32 %v623, 0.0
    %v720 = vmax.f32 %v628, 0.0
    %v721 = vmax.f32 %v631, 0.0
    %v722 = vmax.f32 %v636, 0.0
    %v723 = vmax.f32 %v639, 0.0
    %v724 = vmax.f32 %v644, 0.0
    %v725 = vmax.f32 %v647, 0.0
    %v726 = vmax.f32 %v652, 0.0
    %v727 = vmax.f32 %v655, 0.0
    %v728 = vmax.f32 %v660, 0.0
    %v729 = vmax.f32 %v663, 0.0
    %v730 = vld [vmem:[#allocation2] sm:$0x3]
    %v731 = vadd.f32 %v666, %v667
    %v732 = vadd.f32 %v731, %v668
    %v733 = vadd.f32 %v732, %v669
    %v734 = vadd.f32 %v733, %v670
    %v735 = vadd.f32 %v734, %v671
    %v736 = vadd.f32 %v735, %v672
    %v737 = vadd.f32 %v736, %v673
    %v738 = vadd.f32 %v737, %v674
    %v739 = vadd.f32 %v738, %v675
    %v740 = vadd.f32 %v739, %v676
    %v741 = vadd.f32 %v740, %v677
    %v742 = vadd.f32 %v741, %v678
    %v743 = vadd.f32 %v742, %v679
    %v744 = vadd.f32 %v743, %v680
    %v745 = vadd.f32 %v744, %v681
    %v746 = vadd.f32 %v745, %v682
    %v747 = vadd.f32 %v746, %v683
    %v748 = vadd.f32 %v747, %v684
    %v749 = vadd.f32 %v748, %v685
    %v750 = vadd.f32 %v749, %v686
    %v751 = vadd.f32 %v750, %v687
    %v752 = vadd.f32 %v751, %v688
    %v753 = vadd.f32 %v752, %v689
    %v754 = vadd.f32 %v753, %v690
    %v755 = vadd.f32 %v754, %v691
    %v756 = vadd.f32 %v755, %v692
    %v757 = vadd.f32 %v756, %v693
    %v758 = vadd.f32 %v757, %v694
    %v759 = vadd.f32 %v758, %v695
    %v760 = vadd.f32 %v759, %v696
    %v761 = vadd.f32 %v760, %v697
    %v762 = vrot.slane %v761, 4
    %v763 = vadd.f32 %v761, %v762
    %v764 = vrot.slane %v763, 2
    %v765 = vadd.f32 %v763, %v764
    %v766 = vrot.slane %v765, 1
    %v767 = vadd.f32 %v765, %v766
    %v768 = vadd.f32 %v698, %v699
    %v769 = vadd.f32 %v768, %v700
    %v770 = vadd.f32 %v769, %v701
    %v771 = vadd.f32 %v770, %v702
    %v772 = vadd.f32 %v771, %v703
    %v773 = vadd.f32 %v772, %v704
    %v774 = vadd.f32 %v773, %v705
    %v775 = vadd.f32 %v774, %v706
    %v776 = vadd.f32 %v775, %v707
    %v777 = vadd.f32 %v776, %v708
    %v778 = vadd.f32 %v777, %v709
    %v779 = vadd.f32 %v778, %v710
    %v780 = vadd.f32 %v779, %v711
    %v781 = vadd.f32 %v780, %v712
    %v782 = vadd.f32 %v781, %v713
    %v783 = vadd.f32 %v782, %v714
    %v784 = vadd.f32 %v783, %v715
    %v785 = vadd.f32 %v784, %v716
    %v786 = vadd.f32 %v785, %v717
    %v787 = vadd.f32 %v786, %v718
    %v788 = vadd.f32 %v787, %v719
    %v789 = vadd.f32 %v788, %v720
    %v790 = vadd.f32 %v789, %v721
    %v791 = vadd.f32 %v790, %v722
    %v792 = vadd.f32 %v791, %v723
    %v793 = vadd.f32 %v792, %v724
    %v794 = vadd.f32 %v793, %v725
    %v795 = vadd.f32 %v794, %v726
    %v796 = vadd.f32 %v795, %v727
    %v797 = vadd.f32 %v796, %v728
    %v798 = vadd.f32 %v797, %v729
    %v799 = vrot.slane %v798, 4
    %v800 = vadd.f32 %v798, %v799
    %v801 = vrot.slane %v800, 2
    %v802 = vadd.f32 %v800, %v801
    %v803 = vrot.slane %v802, 1
    %v804 = vadd.f32 %v802, %v803
    %vm807 = vcmask 1041409
    %v808 = vsel %vm807, %v804, %v767
    %v810 = vadd.f32 %v730, %v808
    %811 = vst [vmem:[#allocation2] sm:$0x3] %v810
    // Predicated region
    $region30: #{simple_net_forward.1} parent=1 // pred_check
      %p812 = pneg %p27
    $region31: #{simple_net_forward.1} parent=1 // pred_check_branch
      %814 = sbr.rel (%p812) target = $region33
    $region32: #{simple_net_forward.1} parent=1 // pred_region
      %v815 = vld [vmem:[#allocation2] sm:$0x3]
      %v816 = vmul.f32 %v815, 0.00390625
      %v817 = vld [vmem:[%s2] sm:$0xff]
      %v818 = vld [vmem:[%s2 + $0x8] sm:$0xff]
      %v819 = vld [vmem:[%s2 + $0x10] sm:$0xff]
      %v820 = vld [vmem:[%s2 + $0x18] sm:$0xff]
      %v821 = vld [vmem:[%s2 + $0x20] sm:$0xff]
      %v822 = vld [vmem:[%s2 + $0x28] sm:$0xff]
      %v823 = vld [vmem:[%s2 + $0x30] sm:$0xff]
      %v824 = vld [vmem:[%s2 + $0x38] sm:$0xff]
      %v825 = vld [vmem:[%s2 + $0x40] sm:$0xff]
      %v826 = vld [vmem:[%s2 + $0x48] sm:$0xff]
      %v827 = vld [vmem:[%s2 + $0x50] sm:$0xff]
      %v828 = vld [vmem:[%s2 + $0x58] sm:$0xff]
      %v829 = vld [vmem:[%s2 + $0x60] sm:$0xff]
      %v830 = vld [vmem:[%s2 + $0x68] sm:$0xff]
      %v831 = vld [vmem:[%s2 + $0x70] sm:$0xff]
      %v832 = vld [vmem:[%s2 + $0x78] sm:$0xff]
      %v833 = vld [vmem:[%s3] sm:$0x1]
      %v835 = vlaneseq
      %v836 = vshrl.u32 %v835, 7
      %v837 = vsub.s32 0, %v836
      %v838 = vrot.slane %v833, %v837
      %840 = vmatprep.subr.mxu0 0.0
      %841 = vmatpush1.msra.mxu0 %v817
      %842 = vmatprep.subr.mxu0 0.0
      %843 = vmatpush1.msra.mxu0 %v818
      %844 = vmatprep.subr.mxu0 0.0
      %845 = vmatpush1.msra.mxu0 %v819
      %846 = vmatprep.subr.mxu0 0.0
      %847 = vmatpush1.msra.mxu0 %v820
      %848 = vmatprep.subr.mxu0 0.0
      %849 = vmatpush1.msra.mxu0 %v821
      %850 = vmatprep.subr.mxu0 0.0
      %851 = vmatpush1.msra.mxu0 %v822
      %852 = vmatprep.subr.mxu0 0.0
      %853 = vmatpush1.msra.mxu0 %v823
      %854 = vmatprep.subr.mxu0 0.0
      %855 = vmatpush1.msra.mxu0 %v824
      %856 = vmatprep.subr.mxu0 0.0
      %857 = vmatpush1.msra.mxu0 %v825
      %858 = vmatprep.subr.mxu0 0.0
      %859 = vmatpush1.msra.mxu0 %v826
      %860 = vmatprep.subr.mxu0 0.0
      %861 = vmatpush1.msra.mxu0 %v827
      %862 = vmatprep.subr.mxu0 0.0
      %863 = vmatpush1.msra.mxu0 %v828
      %864 = vmatprep.subr.mxu0 0.0
      %865 = vmatpush1.msra.mxu0 %v829
      %866 = vmatprep.subr.mxu0 0.0
      %867 = vmatpush1.msra.mxu0 %v830
      %868 = vmatprep.subr.mxu0 0.0
      %869 = vmatpush1.msra.mxu0 %v831
      %870 = vmatprep.subr.mxu0 0.0
      %871 = vmatpush1.msra.mxu0 %v832
      %872 = vmatprep.subr.mxu0 0.0
      %873 = vmatpush1.msra.mxu0 0.0
      %874 = vmatprep.subr.mxu0 0.0
      %875 = vmatpush1.msra.mxu0 0.0
      %876 = vmatprep.subr.mxu0 0.0
      %877 = vmatpush1.msra.mxu0 0.0
      %878 = vmatprep.subr.mxu0 0.0
      %879 = vmatpush1.msra.mxu0 0.0
      %880 = vmatprep.subr.mxu0 0.0
      %881 = vmatpush1.msra.mxu0 0.0
      %882 = vmatprep.subr.mxu0 0.0
      %883 = vmatpush1.msra.mxu0 0.0
      %884 = vmatprep.subr.mxu0 0.0
      %885 = vmatpush1.msra.mxu0 0.0
      %886 = vmatprep.subr.mxu0 0.0
      %887 = vmatpush1.msra.mxu0 0.0
      %888 = vmatprep.subr.mxu0 0.0
      %889 = vmatpush1.msra.mxu0 0.0
      %890 = vmatprep.subr.mxu0 0.0
      %891 = vmatpush1.msra.mxu0 0.0
      %892 = vmatprep.subr.mxu0 0.0
      %893 = vmatpush1.msra.mxu0 0.0
      %894 = vmatprep.subr.mxu0 0.0
      %895 = vmatpush1.msra.mxu0 0.0
      %896 = vmatprep.subr.mxu0 0.0
      %897 = vmatpush1.msra.mxu0 0.0
      %898 = vmatprep.subr.mxu0 0.0
      %899 = vmatpush1.msra.mxu0 0.0
      %900 = vmatprep.subr.mxu0 0.0
      %901 = vmatpush1.msra.mxu0 0.0
      %902 = vmatprep.subr.mxu0 0.0
      %903 = vmatpush1.msra.mxu0 0.0
      %904 = vmatprep.mubr.f32.mxu0 0.0
      %905 = vmatmul.mubr.f32.gmra.mrb[0].mxu0 %v816
      %v906 = vpop.f32.mrb[0].mxu0
      %v907 = vadd.f32 %v838, %v906
      %v908 = vpop.f32.mrb[0].mxu0
      %909 = vdwg.mxu0
      %v910 = vmax.f32 %v907, 0.0
      %911 = vst [vmem:[#allocation3] sm:$0x3] %v910
      %v912 = vld [vmem:[%s4] sm:$0xff]
      %v913 = vld [vmem:[%s4 + $0x8] sm:$0xff]
      %v914 = vld [vmem:[%s4 + $0x10] sm:$0xff]
      %v915 = vld [vmem:[%s4 + $0x18] sm:$0xff]
      %v916 = vld [vmem:[%s4 + $0x20] sm:$0xff]
      %v917 = vld [vmem:[%s4 + $0x28] sm:$0xff]
      %v918 = vld [vmem:[%s4 + $0x30] sm:$0xff]
      %v919 = vld [vmem:[%s4 + $0x38] sm:$0xff]
      %v920 = vld [vmem:[%s4 + $0x40] sm:$0xff]
      %v921 = vld [vmem:[%s4 + $0x48] sm:$0xff]
      %v922 = vld [vmem:[%s4 + $0x50] sm:$0xff]
      %v923 = vld [vmem:[%s4 + $0x58] sm:$0xff]
      %v924 = vld [vmem:[%s4 + $0x60] sm:$0xff]
      %v925 = vld [vmem:[%s4 + $0x68] sm:$0xff]
      %v926 = vld [vmem:[%s4 + $0x70] sm:$0xff]
      %v927 = vld [vmem:[%s4 + $0x78] sm:$0xff]
      %v928 = vld [vmem:[%s5] sm:$0x1]
      %v930 = vlaneseq
      %v931 = vshrl.u32 %v930, 7
      %v932 = vsub.s32 0, %v931
      %v933 = vrot.slane %v928, %v932
      %935 = vmatprep.subr.mxu0 0.0
      %936 = vmatpush1.msra.mxu0 %v912
      %937 = vmatprep.subr.mxu0 0.0
      %938 = vmatpush1.msra.mxu0 %v913
      %939 = vmatprep.subr.mxu0 0.0
      %940 = vmatpush1.msra.mxu0 %v914
      %941 = vmatprep.subr.mxu0 0.0
      %942 = vmatpush1.msra.mxu0 %v915
      %943 = vmatprep.subr.mxu0 0.0
      %944 = vmatpush1.msra.mxu0 %v916
      %945 = vmatprep.subr.mxu0 0.0
      %946 = vmatpush1.msra.mxu0 %v917
      %947 = vmatprep.subr.mxu0 0.0
      %948 = vmatpush1.msra.mxu0 %v918
      %949 = vmatprep.subr.mxu0 0.0
      %950 = vmatpush1.msra.mxu0 %v919
      %951 = vmatprep.subr.mxu0 0.0
      %952 = vmatpush1.msra.mxu0 %v920
      %953 = vmatprep.subr.mxu0 0.0
      %954 = vmatpush1.msra.mxu0 %v921
      %955 = vmatprep.subr.mxu0 0.0
      %956 = vmatpush1.msra.mxu0 %v922
      %957 = vmatprep.subr.mxu0 0.0
      %958 = vmatpush1.msra.mxu0 %v923
      %959 = vmatprep.subr.mxu0 0.0
      %960 = vmatpush1.msra.mxu0 %v924
      %961 = vmatprep.subr.mxu0 0.0
      %962 = vmatpush1.msra.mxu0 %v925
      %963 = vmatprep.subr.mxu0 0.0
      %964 = vmatpush1.msra.mxu0 %v926
      %965 = vmatprep.subr.mxu0 0.0
      %966 = vmatpush1.msra.mxu0 %v927
      %967 = vmatprep.subr.mxu0 0.0
      %968 = vmatpush1.msra.mxu0 0.0
      %969 = vmatprep.subr.mxu0 0.0
      %970 = vmatpush1.msra.mxu0 0.0
      %971 = vmatprep.subr.mxu0 0.0
      %972 = vmatpush1.msra.mxu0 0.0
      %973 = vmatprep.subr.mxu0 0.0
      %974 = vmatpush1.msra.mxu0 0.0
      %975 = vmatprep.subr.mxu0 0.0
      %976 = vmatpush1.msra.mxu0 0.0
      %977 = vmatprep.subr.mxu0 0.0
      %978 = vmatpush1.msra.mxu0 0.0
      %979 = vmatprep.subr.mxu0 0.0
      %980 = vmatpush1.msra.mxu0 0.0
      %981 = vmatprep.subr.mxu0 0.0
      %982 = vmatpush1.msra.mxu0 0.0
      %983 = vmatprep.subr.mxu0 0.0
      %984 = vmatpush1.msra.mxu0 0.0
      %985 = vmatprep.subr.mxu0 0.0
      %986 = vmatpush1.msra.mxu0 0.0
      %987 = vmatprep.subr.mxu0 0.0
      %988 = vmatpush1.msra.mxu0 0.0
      %989 = vmatprep.subr.mxu0 0.0
      %990 = vmatpush1.msra.mxu0 0.0
      %991 = vmatprep.subr.mxu0 0.0
      %992 = vmatpush1.msra.mxu0 0.0
      %993 = vmatprep.subr.mxu0 0.0
      %994 = vmatpush1.msra.mxu0 0.0
      %995 = vmatprep.subr.mxu0 0.0
      %996 = vmatpush1.msra.mxu0 0.0
      %997 = vmatprep.subr.mxu0 0.0
      %998 = vmatpush1.msra.mxu0 0.0
      %999 = vmatprep.mubr.f32.mxu0 0.0
      %1000 = vmatmul.mubr.f32.gmra.mrb[0].mxu0 %v910
      %v1001 = vpop.f32.mrb[0].mxu0
      %v1002 = vadd.f32 %v933, %v1001
      %v1003 = vpop.f32.mrb[0].mxu0
      %1004 = vdwg.mxu0
      %1005 = vst [vmem:[%s7] sm:$0x3] %v1002
    $region33: #{simple_net_forward.1} parent=1 // pred_fallthru
      _
    // Predicated region
    $region34: #{simple_net_forward.1} parent=1 // pred_check
      _
    $region35: #{simple_net_forward.1} parent=1 // pred_check_branch
      %1007 = sbr.rel (0) target = $region37
    $region36: #{simple_net_forward.1} parent=1 // pred_region
      %s1009 = ssub.s32 32, 32
      %1010 = vsyncadd [#allocation4], %s1009
      %s1012 = sshll.u32 [#allocation3], 4
      %s1013 = int_to_ptr.vmem [resolvable:$true] %s1012
      %1015 = dma.vmem_to_hbm [thread:$0]  %s1013, 32, %s6, [#allocation4]
    $region37: #{simple_net_forward.1} parent=1 // pred_fallthru
      _
    // Predicated region
    $region38: #{simple_net_forward.1} parent=1 // pred_check
      _
    $region39: #{simple_net_forward.1} parent=1 // pred_check_branch
      %1017 = sbr.rel (0) target = $region41
    $region40: #{simple_net_forward.1} parent=1 // pred_region
      _
    $region41: #{simple_net_forward.1} parent=1 // pred_fallthru
      _
    // Predicated region
    $region42: #{simple_net_forward.1} parent=1 // pred_check
      _
    $region43: #{simple_net_forward.1} parent=1 // pred_check_branch
      %1019 = sbr.rel (0) target = $region45
    $region44: #{simple_net_forward.1} parent=1 // pred_region
      %1020 = dma.done [#allocation4], 32
    $region45: #{simple_net_forward.1} parent=1 // pred_fallthru
      _
    // Predicated region
    $region46: #{simple_net_forward.1} parent=1 // pred_check
      _
    $region47: #{simple_net_forward.1} parent=1 // pred_check_branch
      %1022 = sbr.rel (0) target = $region49
    $region48: #{simple_net_forward.1} parent=1 // pred_region
      _
    $region49: #{simple_net_forward.1} parent=1 // pred_fallthru
      _
    %1023 = vsyncpa [#allocation4], 1

</llo_original>
